<compile_context>
chip_gen: v6e
topology: v6e:2x2x1
jax: 0.10.0
libtpu: 0.0.40
codegen_flags: <defaults>
</compile_context>

<pallas_src>
import jax
import jax.numpy as jnp
from jax.experimental import pallas as pl
from jax.experimental.pallas import tpu as pltpu


def _round_up(n, m):
    return ((n + m - 1) // m) * m


def _mlp_kernel(x_ref, w1_ref, w2_ref, w3_ref, w4_ref, b_ref, o_ref):
    """Whole DQN MLP for one batch tile.

    All matmuls accumulate in f32 on the MXU; bias+ReLU run in f32 on the VPU.
    Inter-layer activations (and the streamed x tile) are cast to the weight
    dtype (bf16 by default) so every MXU pass uses its native operand width.
    """
    hp = w1_ref.shape[1]      # padded hidden width (lane-dense, multiple of 128)
    ow = w4_ref.shape[1]      # true (unpadded) output width
    cdt = w1_ref.dtype

    x = x_ref[...].astype(cdt)                       # VPU cast, hidden under MXU

    h = jnp.dot(x, w1_ref[...], preferred_element_type=jnp.float32)
    h = jnp.maximum(h + b_ref[0:1, :hp], 0.0).astype(cdt)

    h = jnp.dot(h, w2_ref[...], preferred_element_type=jnp.float32)
    h = jnp.maximum(h + b_ref[1:2, :hp], 0.0).astype(cdt)

    h = jnp.dot(h, w3_ref[...], preferred_element_type=jnp.float32)
    h = jnp.maximum(h + b_ref[2:3, :hp], 0.0).astype(cdt)

    o = jnp.dot(h, w4_ref[...], preferred_element_type=jnp.float32)
    o_ref[...] = (o + b_ref[3:4, :ow]).astype(o_ref.dtype)


def dqn_forward(x, params, *, block_rows=512, weight_dtype=jnp.bfloat16):
    """Forward pass of the DQN MLP.

    x: (B, input_size) float array.
    params: dict with w1..w4 stored as (in_features, out_features) and b1..b4
            as (1, out_features) — i.e. torch Linear weights transposed.
    block_rows: max batch tile size (rows per grid step).
    weight_dtype: dtype of the matmul operands (bf16 by default; pass
            jnp.float32 for a bit-near-exact f32 path). Accumulation is f32.
    """
    w = [params[f"w{i}"] for i in range(1, 5)]
    b = [jnp.reshape(params[f"b{i}"], (1, -1)).astype(jnp.float32) for i in range(1, 5)]

    B, in_size = x.shape
    hidden = w[0].shape[1]
    out_size = w[3].shape[1]

    cdt = jnp.dtype(weight_dtype if weight_dtype is not None else x.dtype)

    # Feature padding:
    #  * K (= in_size) only to a sublane multiple (8 f32 / 16 bf16); x keeps a
    #    full-extent last-dim block, so no 128-lane pad of the streamed operand.
    #  * hidden to 128 lanes (zero pad is exact through Linear+ReLU).
    #  * output width stays unpadded (masked narrow store beats 32x writeback).
    k_align = max(8, 32 // cdt.itemsize)
    kp = _round_up(in_size, k_align)
    hp = _round_up(hidden, 128)

    def pad2(a, rows, cols, dtype):
        a = a.astype(dtype)
        if a.shape == (rows, cols):
            return a
        return jnp.pad(a, ((0, rows - a.shape[0]), (0, cols - a.shape[1])))

    xq = x if kp == in_size else jnp.pad(x, ((0, 0), (0, kp - in_size)))
    w1 = pad2(w[0], kp, hp, cdt)
    w2 = pad2(w[1], hp, hp, cdt)
    w3 = pad2(w[2], hp, hp, cdt)
    w4 = pad2(w[3], hp, out_size, cdt)

    wb = max(hp, out_size)
    bias = jnp.concatenate([pad2(bi, 1, wb, jnp.float32) for bi in b], axis=0)  # (4, wb)

    # Batch tiling: multiple-of-8 row tiles, no wrapper-side batch padding
    # (Pallas handles the ragged last block; rows are independent along M).
    # Aim for >= 2 grid steps so both v7x TensorCores get work.
    tb = min(block_rows, max(8, _round_up(pl.cdiv(B, 2), 8)))
    grid = (pl.cdiv(B, tb),)

    witem = cdt.itemsize
    xitem = jnp.dtype(xq.dtype).itemsize
    weight_elems = kp * hp + 2 * hp * hp + hp * out_size
    flops = 2 * B * weight_elems
    bytes_accessed = (B * kp * xitem + weight_elems * witem
                      + bias.size * 4 + B * out_size * 4)

    # Explicit scoped-VMEM budget: resident weights (worst case double-buffered
    # on the fallback path) + streamed x/out tiles + f32 intermediates + margin.
    vmem_need = (2 * weight_elems * witem + 2 * bias.size * 4
                 + 2 * tb * kp * xitem + 2 * tb * out_size * 4
                 + 4 * tb * hp * 4)
    vmem_limit = int(min(max(2 * vmem_need, 16 * 1024 * 1024), 64 * 1024 * 1024))

    def run(weight_pipeline_mode):
        wkw = ({} if weight_pipeline_mode is None
               else {"pipeline_mode": weight_pipeline_mode})
        const = lambda i: (0, 0)
        call = pl.pallas_call(
            _mlp_kernel,
            out_shape=jax.ShapeDtypeStruct((B, out_size), jnp.float32),
            grid=grid,
            in_specs=[
                pl.BlockSpec((tb, kp), lambda i: (i, 0)),     # x: streamed per tile
                pl.BlockSpec((kp, hp), const, **wkw),         # weights: VMEM-resident
                pl.BlockSpec((hp, hp), const, **wkw),
                pl.BlockSpec((hp, hp), const, **wkw),
                pl.BlockSpec((hp, out_size), const, **wkw),
                pl.BlockSpec((4, wb), const, **wkw),          # all 4 biases, one ref
            ],
            out_specs=pl.BlockSpec((tb, out_size), lambda i: (i, 0)),
            compiler_params=pltpu.CompilerParams(
                dimension_semantics=("parallel",),
                vmem_limit_bytes=vmem_limit),
            cost_estimate=pl.CostEstimate(
                flops=int(flops), transcendentals=0,
                bytes_accessed=int(bytes_accessed)),
        )
        return call(xq, w1, w2, w3, w4, bias)

    try:
        # Constant-index weights only ever hold one block: single-buffer them.
        out = run(pl.Buffered(buffer_count=1))
    except Exception:
        # Fallback (older Pallas without single-buffer pipeline_mode support):
        # identical semantics, default double-buffering.
        out = run(None)

    return out


def init_dqn_params(key, input_size, hidden_size, output_size):
    """Deterministic init matching the PyTorch module's shapes.
    Weights: xavier_uniform (as in DQN.init_weights).
    Biases: PyTorch Linear default uniform(-1/sqrt(fan_in), 1/sqrt(fan_in)).
    Stored as (in_features, out_features) — i.e. torch weight transposed.
    """
    dims = [(input_size, hidden_size),
            (hidden_size, hidden_size),
            (hidden_size, hidden_size),
            (hidden_size, output_size)]
    params = {}
    keys = jax.random.split(key, 2 * len(dims))
    for i, (fan_in, fan_out) in enumerate(dims):
        wk, bk = keys[2 * i], keys[2 * i + 1]
        limit = jnp.sqrt(6.0 / (fan_in + fan_out))          # xavier_uniform
        wmat = jax.random.uniform(wk, (fan_in, fan_out), jnp.float32, -limit, limit)
        blim = 1.0 / jnp.sqrt(fan_in)
        bias = jax.random.uniform(bk, (1, fan_out), jnp.float32, -blim, blim)
        params[f"w{i + 1}"] = wmat
        params[f"b{i + 1}"] = bias
    return params


if __name__ == "__main__":
    input_size, hidden_size, output_size = 16, 32, 4
    batch = 8

    key = jax.random.PRNGKey(0)
    pkey, xkey = jax.random.split(key)
    params = init_dqn_params(pkey, input_size, hidden_size, output_size)
    x = jax.random.normal(xkey, (batch, input_size), jnp.float32)

    # Pure-JAX f32 reference of the same computation.
    ref = x
    for i in range(1, 5):
        ref = ref @ params[f"w{i}"] + params[f"b{i}"]
        if i < 4:
            ref = jnp.maximum(ref, 0.0)

    # f32-operand path: near-exact vs the reference.
    out_f32 = jax.block_until_ready(dqn_forward(x, params, weight_dtype=jnp.float32))
    assert out_f32.shape == (batch, output_size)
    assert jnp.allclose(out_f32, ref, atol=1e-5, rtol=1e-5)

    # Default bf16-operand path (f32 accumulation): looser tolerance by design.
    out_bf16 = jax.block_until_ready(dqn_forward(x, params))
    assert out_bf16.shape == (batch, output_size)
    assert jnp.allclose(out_bf16, ref, atol=5e-2, rtol=5e-2)

    print("KERNEL_OK")
</pallas_src>

<mosaic_0001>
module attributes {stable_mosaic.version = 11 : i64} {
  func.func @_mlp_kernel(%arg0: i32, %arg1: memref<8x16xf32, #tpu.memory_space<vmem>>, %arg2: memref<16x128xf32, #tpu.memory_space<vmem>>, %arg3: memref<128x128xf32, #tpu.memory_space<vmem>>, %arg4: memref<128x128xf32, #tpu.memory_space<vmem>>, %arg5: memref<128x4xf32, #tpu.memory_space<vmem>>, %arg6: memref<4x128xf32, #tpu.memory_space<vmem>>, %arg7: memref<8x4xf32, #tpu.memory_space<vmem>>) attributes {dimension_semantics = [#tpu.dimension_semantics<parallel>], iteration_bounds = array<i64: 1>, scalar_prefetch = 0 : i64, scratch_operands = 0 : i64, tpu.core_type = #tpu.core_type<tc>, window_params = [{transform_indices = @transform_0, window_bounds = array<i64: 8, 16>}, {pipeline_mode = #tpu.pipeline_mode<synchronous>, transform_indices = @transform_1, window_bounds = array<i64: 16, 128>}, {pipeline_mode = #tpu.pipeline_mode<synchronous>, transform_indices = @transform_2, window_bounds = array<i64: 128, 128>}, {pipeline_mode = #tpu.pipeline_mode<synchronous>, transform_indices = @transform_3, window_bounds = array<i64: 128, 128>}, {pipeline_mode = #tpu.pipeline_mode<synchronous>, transform_indices = @transform_4, window_bounds = array<i64: 128, 4>}, {pipeline_mode = #tpu.pipeline_mode<synchronous>, transform_indices = @transform_5, window_bounds = array<i64: 4, 128>}, {transform_indices = @transform_6, window_bounds = array<i64: 8, 4>}]} {
    %c0 = arith.constant 0 : index
    %c0_0 = arith.constant 0 : index
    %0 = vector.load %arg1[%c0, %c0_0] : memref<8x16xf32, #tpu.memory_space<vmem>>, vector<8x16xf32>
    %c0_1 = arith.constant 0 : index
    %c0_2 = arith.constant 0 : index
    %1 = vector.load %arg2[%c0_1, %c0_2] : memref<16x128xf32, #tpu.memory_space<vmem>>, vector<16x128xf32>
    %cst = arith.constant dense<0.000000e+00> : vector<8x128xf32>
    %2 = tpu.matmul %0, %1, %cst {dimension_numbers = #tpu.dot_dimension_numbers<[1], [0], [0], [1], [0, 0, 1, 1], [], []>} : vector<8x16xf32>, vector<16x128xf32>, vector<8x128xf32> -> vector<8x128xf32>
    %c0_3 = arith.constant 0 : index
    %c0_4 = arith.constant 0 : index
    %3 = vector.load %arg6[%c0_3, %c0_4] : memref<4x128xf32, #tpu.memory_space<vmem>>, vector<1x128xf32>
    %4 = vector.broadcast %3 : vector<1x128xf32> to vector<8x128xf32>
    %5 = arith.addf %2, %4 : vector<8x128xf32>
    %cst_5 = arith.constant 0.000000e+00 : f32
    %6 = vector.broadcast %cst_5 : f32 to vector<8x128xf32>
    %7 = arith.maximumf %5, %6 : vector<8x128xf32>
    %c0_6 = arith.constant 0 : index
    %c0_7 = arith.constant 0 : index
    %8 = vector.load %arg3[%c0_6, %c0_7] : memref<128x128xf32, #tpu.memory_space<vmem>>, vector<128x128xf32>
    %cst_8 = arith.constant dense<0.000000e+00> : vector<8x128xf32>
    %9 = tpu.matmul %7, %8, %cst_8 {dimension_numbers = #tpu.dot_dimension_numbers<[1], [0], [0], [1], [0, 0, 1, 1], [], []>} : vector<8x128xf32>, vector<128x128xf32>, vector<8x128xf32> -> vector<8x128xf32>
    %c1 = arith.constant 1 : index
    %c0_9 = arith.constant 0 : index
    %10 = vector.load %arg6[%c1, %c0_9] : memref<4x128xf32, #tpu.memory_space<vmem>>, vector<1x128xf32>
    %11 = vector.broadcast %10 : vector<1x128xf32> to vector<8x128xf32>
    %12 = arith.addf %9, %11 : vector<8x128xf32>
    %cst_10 = arith.constant 0.000000e+00 : f32
    %13 = vector.broadcast %cst_10 : f32 to vector<8x128xf32>
    %14 = arith.maximumf %12, %13 : vector<8x128xf32>
    %c0_11 = arith.constant 0 : index
    %c0_12 = arith.constant 0 : index
    %15 = vector.load %arg4[%c0_11, %c0_12] : memref<128x128xf32, #tpu.memory_space<vmem>>, vector<128x128xf32>
    %cst_13 = arith.constant dense<0.000000e+00> : vector<8x128xf32>
    %16 = tpu.matmul %14, %15, %cst_13 {dimension_numbers = #tpu.dot_dimension_numbers<[1], [0], [0], [1], [0, 0, 1, 1], [], []>} : vector<8x128xf32>, vector<128x128xf32>, vector<8x128xf32> -> vector<8x128xf32>
    %c2 = arith.constant 2 : index
    %c0_14 = arith.constant 0 : index
    %17 = vector.load %arg6[%c2, %c0_14] : memref<4x128xf32, #tpu.memory_space<vmem>>, vector<1x128xf32>
    %18 = vector.broadcast %17 : vector<1x128xf32> to vector<8x128xf32>
    %19 = arith.addf %16, %18 : vector<8x128xf32>
    %cst_15 = arith.constant 0.000000e+00 : f32
    %20 = vector.broadcast %cst_15 : f32 to vector<8x128xf32>
    %21 = arith.maximumf %19, %20 : vector<8x128xf32>
    %c0_16 = arith.constant 0 : index
    %c0_17 = arith.constant 0 : index
    %22 = vector.load %arg5[%c0_16, %c0_17] : memref<128x4xf32, #tpu.memory_space<vmem>>, vector<128x4xf32>
    %cst_18 = arith.constant dense<0.000000e+00> : vector<8x4xf32>
    %23 = tpu.matmul %21, %22, %cst_18 {dimension_numbers = #tpu.dot_dimension_numbers<[1], [0], [0], [1], [0, 0, 1, 1], [], []>} : vector<8x128xf32>, vector<128x4xf32>, vector<8x4xf32> -> vector<8x4xf32>
    %c3 = arith.constant 3 : index
    %c0_19 = arith.constant 0 : index
    %24 = vector.load %arg6[%c3, %c0_19] : memref<4x128xf32, #tpu.memory_space<vmem>>, vector<1x4xf32>
    %25 = vector.broadcast %24 : vector<1x4xf32> to vector<8x4xf32>
    %26 = arith.addf %23, %25 : vector<8x4xf32>
    %c0_20 = arith.constant 0 : index
    %c0_21 = arith.constant 0 : index
    %27 = vector.load %arg7[%c0_20, %c0_21] : memref<8x4xf32, #tpu.memory_space<vmem>>, vector<8x4xf32>
    tpu.vector_store %arg7[%c0_20, %c0_21], %26 {strides = array<i32>} : memref<8x4xf32, #tpu.memory_space<vmem>>, vector<8x4xf32>,
    return
  }
  func.func @transform_0(%arg0: i32) -> (i32, i32) {
    %c0_i32 = arith.constant 0 : i32
    %c0_i32_0 = arith.constant 0 : i32
    return %arg0, %c0_i32 : i32, i32
  }
  func.func @transform_1(%arg0: i32) -> (i32, i32) {
    %c0_i32 = arith.constant 0 : i32
    %c0_i32_0 = arith.constant 0 : i32
    %c0_i32_1 = arith.constant 0 : i32
    return %c0_i32, %c0_i32_0 : i32, i32
  }
  func.func @transform_2(%arg0: i32) -> (i32, i32) {
    %c0_i32 = arith.constant 0 : i32
    %c0_i32_0 = arith.constant 0 : i32
    %c0_i32_1 = arith.constant 0 : i32
    return %c0_i32, %c0_i32_0 : i32, i32
  }
  func.func @transform_3(%arg0: i32) -> (i32, i32) {
    %c0_i32 = arith.constant 0 : i32
    %c0_i32_0 = arith.constant 0 : i32
    %c0_i32_1 = arith.constant 0 : i32
    return %c0_i32, %c0_i32_0 : i32, i32
  }
  func.func @transform_4(%arg0: i32) -> (i32, i32) {
    %c0_i32 = arith.constant 0 : i32
    %c0_i32_0 = arith.constant 0 : i32
    %c0_i32_1 = arith.constant 0 : i32
    return %c0_i32, %c0_i32_0 : i32, i32
  }
  func.func @transform_5(%arg0: i32) -> (i32, i32) {
    %c0_i32 = arith.constant 0 : i32
    %c0_i32_0 = arith.constant 0 : i32
    %c0_i32_1 = arith.constant 0 : i32
    return %c0_i32, %c0_i32_0 : i32, i32
  }
  func.func @transform_6(%arg0: i32) -> (i32, i32) {
    %c0_i32 = arith.constant 0 : i32
    %c0_i32_0 = arith.constant 0 : i32
    return %arg0, %c0_i32 : i32, i32
  }
}

module attributes {stable_mosaic.version = 11 : i64} {
  func.func @_mlp_kernel(%arg0: i32, %arg1: memref<8x16xf32, #tpu.memory_space<vmem>>, %arg2: memref<16x128xf32, #tpu.memory_space<vmem>>, %arg3: memref<128x128xf32, #tpu.memory_space<vmem>>, %arg4: memref<128x128xf32, #tpu.memory_space<vmem>>, %arg5: memref<128x4xf32, #tpu.memory_space<vmem>>, %arg6: memref<4x128xf32, #tpu.memory_space<vmem>>, %arg7: memref<8x4xf32, #tpu.memory_space<vmem>>) attributes {dimension_semantics = [#tpu.dimension_semantics<parallel>], iteration_bounds = array<i64: 1>, scalar_prefetch = 0 : i64, scratch_operands = 0 : i64, tpu.core_type = #tpu.core_type<tc>, window_params = [{transform_indices = @transform_0, window_bounds = array<i64: 8, 16>}, {pipeline_mode = #tpu.pipeline_mode<synchronous>, transform_indices = @transform_1, window_bounds = array<i64: 16, 128>}, {pipeline_mode = #tpu.pipeline_mode<synchronous>, transform_indices = @transform_2, window_bounds = array<i64: 128, 128>}, {pipeline_mode = #tpu.pipeline_mode<synchronous>, transform_indices = @transform_3, window_bounds = array<i64: 128, 128>}, {pipeline_mode = #tpu.pipeline_mode<synchronous>, transform_indices = @transform_4, window_bounds = array<i64: 128, 4>}, {pipeline_mode = #tpu.pipeline_mode<synchronous>, transform_indices = @transform_5, window_bounds = array<i64: 4, 128>}, {transform_indices = @transform_6, window_bounds = array<i64: 8, 4>}]} {
    %c0 = arith.constant 0 : index
    %c0_0 = arith.constant 0 : index
    %0 = vector.load %arg1[%c0, %c0_0] : memref<8x16xf32, #tpu.memory_space<vmem>>, vector<8x16xf32>
    %c0_1 = arith.constant 0 : index
    %c0_2 = arith.constant 0 : index
    %1 = vector.load %arg2[%c0_1, %c0_2] : memref<16x128xf32, #tpu.memory_space<vmem>>, vector<16x128xf32>
    %cst = arith.constant dense<0.000000e+00> : vector<8x128xf32>
    %2 = tpu.matmul %0, %1, %cst {dimension_numbers = #tpu.dot_dimension_numbers<[1], [0], [0], [1], [0, 0, 1, 1], [], []>} : vector<8x16xf32>, vector<16x128xf32>, vector<8x128xf32> -> vector<8x128xf32>
    %c0_3 = arith.constant 0 : index
    %c0_4 = arith.constant 0 : index
    %3 = vector.load %arg6[%c0_3, %c0_4] : memref<4x128xf32, #tpu.memory_space<vmem>>, vector<1x128xf32>
    %4 = vector.broadcast %3 : vector<1x128xf32> to vector<8x128xf32>
    %5 = arith.addf %2, %4 : vector<8x128xf32>
    %cst_5 = arith.constant 0.000000e+00 : f32
    %6 = vector.broadcast %cst_5 : f32 to vector<8x128xf32>
    %7 = arith.maximumf %5, %6 : vector<8x128xf32>
    %c0_6 = arith.constant 0 : index
    %c0_7 = arith.constant 0 : index
    %8 = vector.load %arg3[%c0_6, %c0_7] : memref<128x128xf32, #tpu.memory_space<vmem>>, vector<128x128xf32>
    %cst_8 = arith.constant dense<0.000000e+00> : vector<8x128xf32>
    %9 = tpu.matmul %7, %8, %cst_8 {dimension_numbers = #tpu.dot_dimension_numbers<[1], [0], [0], [1], [0, 0, 1, 1], [], []>} : vector<8x128xf32>, vector<128x128xf32>, vector<8x128xf32> -> vector<8x128xf32>
    %c1 = arith.constant 1 : index
    %c0_9 = arith.constant 0 : index
    %10 = vector.load %arg6[%c1, %c0_9] : memref<4x128xf32, #tpu.memory_space<vmem>>, vector<1x128xf32>
    %11 = vector.broadcast %10 : vector<1x128xf32> to vector<8x128xf32>
    %12 = arith.addf %9, %11 : vector<8x128xf32>
    %cst_10 = arith.constant 0.000000e+00 : f32
    %13 = vector.broadcast %cst_10 : f32 to vector<8x128xf32>
    %14 = arith.maximumf %12, %13 : vector<8x128xf32>
    %c0_11 = arith.constant 0 : index
    %c0_12 = arith.constant 0 : index
    %15 = vector.load %arg4[%c0_11, %c0_12] : memref<128x128xf32, #tpu.memory_space<vmem>>, vector<128x128xf32>
    %cst_13 = arith.constant dense<0.000000e+00> : vector<8x128xf32>
    %16 = tpu.matmul %14, %15, %cst_13 {dimension_numbers = #tpu.dot_dimension_numbers<[1], [0], [0], [1], [0, 0, 1, 1], [], []>} : vector<8x128xf32>, vector<128x128xf32>, vector<8x128xf32> -> vector<8x128xf32>
    %c2 = arith.constant 2 : index
    %c0_14 = arith.constant 0 : index
    %17 = vector.load %arg6[%c2, %c0_14] : memref<4x128xf32, #tpu.memory_space<vmem>>, vector<1x128xf32>
    %18 = vector.broadcast %17 : vector<1x128xf32> to vector<8x128xf32>
    %19 = arith.addf %16, %18 : vector<8x128xf32>
    %cst_15 = arith.constant 0.000000e+00 : f32
    %20 = vector.broadcast %cst_15 : f32 to vector<8x128xf32>
    %21 = arith.maximumf %19, %20 : vector<8x128xf32>
    %c0_16 = arith.constant 0 : index
    %c0_17 = arith.constant 0 : index
    %22 = vector.load %arg5[%c0_16, %c0_17] : memref<128x4xf32, #tpu.memory_space<vmem>>, vector<128x4xf32>
    %cst_18 = arith.constant dense<0.000000e+00> : vector<8x4xf32>
    %23 = tpu.matmul %21, %22, %cst_18 {dimension_numbers = #tpu.dot_dimension_numbers<[1], [0], [0], [1], [0, 0, 1, 1], [], []>} : vector<8x128xf32>, vector<128x4xf32>, vector<8x4xf32> -> vector<8x4xf32>
    %c3 = arith.constant 3 : index
    %c0_19 = arith.constant 0 : index
    %24 = vector.load %arg6[%c3, %c0_19] : memref<4x128xf32, #tpu.memory_space<vmem>>, vector<1x4xf32>
    %25 = vector.broadcast %24 : vector<1x4xf32> to vector<8x4xf32>
    %26 = arith.addf %23, %25 : vector<8x4xf32>
    %c0_20 = arith.constant 0 : index
    %c0_21 = arith.constant 0 : index
    %27 = vector.load %arg7[%c0_20, %c0_21] : memref<8x4xf32, #tpu.memory_space<vmem>>, vector<8x4xf32>
    tpu.vector_store %arg7[%c0_20, %c0_21], %26 {strides = array<i32>} : memref<8x4xf32, #tpu.memory_space<vmem>>, vector<8x4xf32>,
    return
  }
  func.func @transform_0(%arg0: i32) -> (i32, i32) {
    %c0_i32 = arith.constant 0 : i32
    %c0_i32_0 = arith.constant 0 : i32
    return %arg0, %c0_i32 : i32, i32
  }
  func.func @transform_1(%arg0: i32) -> (i32, i32) {
    %c0_i32 = arith.constant 0 : i32
    %c0_i32_0 = arith.constant 0 : i32
    %c0_i32_1 = arith.constant 0 : i32
    return %c0_i32, %c0_i32_0 : i32, i32
  }
  func.func @transform_2(%arg0: i32) -> (i32, i32) {
    %c0_i32 = arith.constant 0 : i32
    %c0_i32_0 = arith.constant 0 : i32
    %c0_i32_1 = arith.constant 0 : i32
    return %c0_i32, %c0_i32_0 : i32, i32
  }
  func.func @transform_3(%arg0: i32) -> (i32, i32) {
    %c0_i32 = arith.constant 0 : i32
    %c0_i32_0 = arith.constant 0 : i32
    %c0_i32_1 = arith.constant 0 : i32
    return %c0_i32, %c0_i32_0 : i32, i32
  }
  func.func @transform_4(%arg0: i32) -> (i32, i32) {
    %c0_i32 = arith.constant 0 : i32
    %c0_i32_0 = arith.constant 0 : i32
    %c0_i32_1 = arith.constant 0 : i32
    return %c0_i32, %c0_i32_0 : i32, i32
  }
  func.func @transform_5(%arg0: i32) -> (i32, i32) {
    %c0_i32 = arith.constant 0 : i32
    %c0_i32_0 = arith.constant 0 : i32
    %c0_i32_1 = arith.constant 0 : i32
    return %c0_i32, %c0_i32_0 : i32, i32
  }
  func.func @transform_6(%arg0: i32) -> (i32, i32) {
    %c0_i32 = arith.constant 0 : i32
    %c0_i32_0 = arith.constant 0 : i32
    return %arg0, %c0_i32 : i32, i32
  }
}

</mosaic_0001>

<llo_original>
// kernel: tpu_custom_call.1
$region0: #{tpu_custom_call.1}
  #allocation0 [shape = 'u32[]', space=smem, size = 0x4, offset = 0x4, fixed_abs, tag = 'smem constant byte address 0x4 - core index']
  #allocation1 [shape = 'u32[144,128]{1,0:T(1,128)}', space=vmem, size = 0x12000, scoped, tag = 'internal scratch']
  %s0 = inlined_call_operand.hbm [shape: f32[8,16], index: 0, kind: input, shape index: {}]
  %s1 = inlined_call_operand.hbm [shape: f32[16,128], index: 1, kind: input, shape index: {}]
  %s2 = inlined_call_operand.vmem [shape: f32[128,128], index: 2, kind: input, shape index: {}]
  %s3 = inlined_call_operand.hbm [shape: f32[128,128], index: 3, kind: input, shape index: {}]
  %s4 = inlined_call_operand.vmem [shape: f32[128,4], index: 4, kind: input, shape index: {}]
  %s5 = inlined_call_operand.vmem [shape: f32[4,128], index: 5, kind: input, shape index: {}]
  %s6 = inlined_call_operand.vmem [shape: f32[8,4], index: 6, kind: output, shape index: {}]
  %s7 = sld [smem:[#allocation0]]
  $region46: #{tpu_custom_call.1} parent=0
    _
  %s9 = ssub.s32 1, %s7
  %s10 = scalar_select 0, %s9, %s7
  $region1: #{tpu_custom_call.1} parent=0
    #allocation2 [shape = 'u8[4096]{0}', space=vmem, size = 0x1000, scoped, tag = 'input window, operand 0, single buffered']
    #allocation3 [shape = 's32[1]{0}', space=sflag, size = 0x4, scoped, tag = 'scoped memory for tpu_custom_call.1']
    #allocation4 [shape = 'u8[8192]{0}', space=vmem, size = 0x2000, scoped, tag = 'input window, operand 1, single buffered']
    #allocation5 [shape = 's32[1]{0}', space=sflag, size = 0x4, scoped, tag = 'scoped memory for tpu_custom_call.1']
    #allocation6 [shape = 'u8[65536]{0}', space=vmem, size = 0x10000, scoped, tag = 'input window, operand 3, single buffered']
    %11 = vsyncpa [#allocation3], 0
    %12 = vsyncpa [#allocation5], 0
    // Predicated region
    $region2: #{tpu_custom_call.1} parent=1 // pred_check
      _
    $region3: #{tpu_custom_call.1} parent=1 // pred_check_branch
      %14 = sbr.rel (0) target = $region5
    $region4: #{tpu_custom_call.1} parent=1 // pred_region
      %s16 = ssub.s32 128, 128
      %17 = vsyncadd [#allocation3], %s16
      %s19 = sshll.u32 [#allocation2], 4
      %s20 = int_to_ptr.vmem [resolvable:$true] %s19
      %22 = dma.hbm_to_vmem [thread:$0]  %s0, 128, %s20, [#allocation3]
    $region5: #{tpu_custom_call.1} parent=1 // pred_fallthru
      _
    // Predicated region
    $region6: #{tpu_custom_call.1} parent=1 // pred_check
      _
    $region7: #{tpu_custom_call.1} parent=1 // pred_check_branch
      %24 = sbr.rel (0) target = $region9
    $region8: #{tpu_custom_call.1} parent=1 // pred_region
      %s26 = ssub.s32 256, 256
      %27 = vsyncadd [#allocation5], %s26
      %s28 = sshll.u32 [#allocation4], 4
      %s29 = int_to_ptr.vmem [resolvable:$true] %s28
      %34 = dma.hbm_to_vmem [thread:$0]  %s1, 256, %s29, [#allocation5], 128, 128, 8
    $region9: #{tpu_custom_call.1} parent=1 // pred_fallthru
      _
    // Predicated region
    $region10: #{tpu_custom_call.1} parent=1 // pred_check
      _
    $region11: #{tpu_custom_call.1} parent=1 // pred_check_branch
      %36 = sbr.rel (0) target = $region13
    $region12: #{tpu_custom_call.1} parent=1 // pred_region
      _
    $region13: #{tpu_custom_call.1} parent=1 // pred_fallthru
      _
    // Predicated region
    $region14: #{tpu_custom_call.1} parent=1 // pred_check
      _
    $region15: #{tpu_custom_call.1} parent=1 // pred_check_branch
      %38 = sbr.rel (0) target = $region17
    $region16: #{tpu_custom_call.1} parent=1 // pred_region
      %s40 = ssub.s32 2048, 2048
      %41 = vsyncadd [#allocation5], %s40
      %s42 = sshll.u32 [#allocation6], 4
      %s43 = int_to_ptr.vmem [resolvable:$true] %s42
      %48 = dma.hbm_to_vmem [thread:$0]  %s3, 2048, %s43, [#allocation5], 128, 128, 8
    $region17: #{tpu_custom_call.1} parent=1 // pred_fallthru
      _
    // Predicated region
    $region18: #{tpu_custom_call.1} parent=1 // pred_check
      _
    $region19: #{tpu_custom_call.1} parent=1 // pred_check_branch
      %50 = sbr.rel (0) target = $region21
    $region20: #{tpu_custom_call.1} parent=1 // pred_region
      _
    $region21: #{tpu_custom_call.1} parent=1 // pred_fallthru
      _
    // Predicated region
    $region22: #{tpu_custom_call.1} parent=1 // pred_check
      _
    $region23: #{tpu_custom_call.1} parent=1 // pred_check_branch
      %52 = sbr.rel (0) target = $region25
    $region24: #{tpu_custom_call.1} parent=1 // pred_region
      _
    $region25: #{tpu_custom_call.1} parent=1 // pred_fallthru
      _
    // Predicated region
    $region26: #{tpu_custom_call.1} parent=1 // pred_check
      _
    $region27: #{tpu_custom_call.1} parent=1 // pred_check_branch
      %54 = sbr.rel (0) target = $region29
    $region28: #{tpu_custom_call.1} parent=1 // pred_region
      %55 = dma.done [#allocation3], 128
    $region29: #{tpu_custom_call.1} parent=1 // pred_fallthru
      _
    // Predicated region
    $region30: #{tpu_custom_call.1} parent=1 // pred_check
      _
    $region31: #{tpu_custom_call.1} parent=1 // pred_check_branch
      %57 = sbr.rel (0) target = $region33
    $region32: #{tpu_custom_call.1} parent=1 // pred_region
      %58 = dma.done [#allocation5], 256
    $region33: #{tpu_custom_call.1} parent=1 // pred_fallthru
      _
    // Predicated region
    $region34: #{tpu_custom_call.1} parent=1 // pred_check
      _
    $region35: #{tpu_custom_call.1} parent=1 // pred_check_branch
      %60 = sbr.rel (0) target = $region37
    $region36: #{tpu_custom_call.1} parent=1 // pred_region
      %61 = dma.done [#allocation5], 2048
    $region37: #{tpu_custom_call.1} parent=1 // pred_fallthru
      _
    %v62 = vld [vmem:[#allocation2] sm:$0xff]
    %v63 = vld [vmem:[#allocation4] sm:$0xff]
    %v64 = vld [vmem:[#allocation4 + $0x8] sm:$0xff]
    %v65 = vld [vmem:[%s5] sm:$0x1]
    %v66 = vlaneseq
    %v67 = vshrl.u32 %v66, 7
    %v68 = vsub.s32 0, %v67
    %v69 = vrot.slane %v65, %v68
    %vm70 = vcmask 130048
    %v72 = vsel %vm70, %v62, 0
    %74 = vmatprep.subr.mxu0 0.0
    %75 = vmatpush1.msra.mxu0 0.0
    %76 = vmatprep.subr.mxu0 0.0
    %77 = vmatpush1.msra.mxu0 0.0
    %78 = vmatprep.subr.mxu0 0.0
    %79 = vmatpush1.msra.mxu0 0.0
    %80 = vmatprep.subr.mxu0 0.0
    %81 = vmatpush1.msra.mxu0 0.0
    %82 = vmatprep.subr.mxu0 0.0
    %83 = vmatpush1.msra.mxu0 0.0
    %84 = vmatprep.subr.mxu0 0.0
    %85 = vmatpush1.msra.mxu0 0.0
    %86 = vmatprep.subr.mxu0 0.0
    %87 = vmatpush1.msra.mxu0 0.0
    %88 = vmatprep.subr.mxu0 0.0
    %89 = vmatpush1.msra.mxu0 0.0
    %90 = vmatprep.subr.mxu0 0.0
    %91 = vmatpush1.msra.mxu0 0.0
    %92 = vmatprep.subr.mxu0 0.0
    %93 = vmatpush1.msra.mxu0 0.0
    %94 = vmatprep.subr.mxu0 0.0
    %95 = vmatpush1.msra.mxu0 0.0
    %96 = vmatprep.subr.mxu0 0.0
    %97 = vmatpush1.msra.mxu0 0.0
    %98 = vmatprep.subr.mxu0 0.0
    %99 = vmatpush1.msra.mxu0 0.0
    %100 = vmatprep.subr.mxu0 0.0
    %101 = vmatpush1.msra.mxu0 0.0
    %102 = vmatprep.subr.mxu0 0.0
    %103 = vmatpush1.msra.mxu0 %v64
    %104 = vmatprep.subr.mxu0 0.0
    %105 = vmatpush1.msra.mxu0 %v63
    %106 = vmatprep.subr.mxu0 0.0
    %107 = vmatpush2.msra.mxu0 0.0
    %108 = vmatprep.subr.mxu0 0.0
    %109 = vmatpush2.msra.mxu0 0.0
    %110 = vmatprep.subr.mxu0 0.0
    %111 = vmatpush2.msra.mxu0 0.0
    %112 = vmatprep.subr.mxu0 0.0
    %113 = vmatpush2.msra.mxu0 0.0
    %114 = vmatprep.subr.mxu0 0.0
    %115 = vmatpush2.msra.mxu0 0.0
    %116 = vmatprep.subr.mxu0 0.0
    %117 = vmatpush2.msra.mxu0 0.0
    %118 = vmatprep.subr.mxu0 0.0
    %119 = vmatpush2.msra.mxu0 0.0
    %120 = vmatprep.subr.mxu0 0.0
    %121 = vmatpush2.msra.mxu0 0.0
    %122 = vmatprep.subr.mxu0 0.0
    %123 = vmatpush2.msra.mxu0 0.0
    %124 = vmatprep.subr.mxu0 0.0
    %125 = vmatpush2.msra.mxu0 0.0
    %126 = vmatprep.subr.mxu0 0.0
    %127 = vmatpush2.msra.mxu0 0.0
    %128 = vmatprep.subr.mxu0 0.0
    %129 = vmatpush2.msra.mxu0 0.0
    %130 = vmatprep.subr.mxu0 0.0
    %131 = vmatpush2.msra.mxu0 0.0
    %132 = vmatprep.subr.mxu0 0.0
    %133 = vmatpush2.msra.mxu0 0.0
    %134 = vmatprep.subr.mxu0 0.0
    %135 = vmatpush2.msra.mxu0 0.0
    %136 = vmatprep.subr.mxu0 0.0
    %137 = vmatpush2.msra.mxu0 0.0
    %138 = vmatprep.mubr.f32.mxu0 0.0
    %139 = vmatmul.mubr.f32.gmra.mxu0 %v72
    %v140 = vpop.f32.mrf.mxu0
    %v141 = vadd.f32 %v69, %v140
    %v142 = vpop.f32.mrf.mxu0
    %143 = vdwg.mxu0
    %v144 = vmax.f32 %v141, 0.0
    %v145 = vld [vmem:[%s2] sm:$0xff]
    %v146 = vld [vmem:[%s2 + $0x8] sm:$0xff]
    %v147 = vld [vmem:[%s2 + $0x10] sm:$0xff]
    %v148 = vld [vmem:[%s2 + $0x18] sm:$0xff]
    %v149 = vld [vmem:[%s2 + $0x20] sm:$0xff]
    %v150 = vld [vmem:[%s2 + $0x28] sm:$0xff]
    %v151 = vld [vmem:[%s2 + $0x30] sm:$0xff]
    %v152 = vld [vmem:[%s2 + $0x38] sm:$0xff]
    %v153 = vld [vmem:[%s2 + $0x40] sm:$0xff]
    %v154 = vld [vmem:[%s2 + $0x48] sm:$0xff]
    %v155 = vld [vmem:[%s2 + $0x50] sm:$0xff]
    %v156 = vld [vmem:[%s2 + $0x58] sm:$0xff]
    %v157 = vld [vmem:[%s2 + $0x60] sm:$0xff]
    %v158 = vld [vmem:[%s2 + $0x68] sm:$0xff]
    %v159 = vld [vmem:[%s2 + $0x70] sm:$0xff]
    %v160 = vld [vmem:[%s2 + $0x78] sm:$0xff]
    %v161 = vld [vmem:[%s5 + $0x1] sm:$0x1]
    %v162 = vlaneseq
    %v163 = vshrl.u32 %v162, 7
    %v164 = vsub.s32 0, %v163
    %v165 = vrot.slane %v161, %v164
    %166 = vmatprep.subr.mxu0 0.0
    %167 = vmatpush1.msra.mxu0 %v160
    %168 = vmatprep.subr.mxu0 0.0
    %169 = vmatpush1.msra.mxu0 %v159
    %170 = vmatprep.subr.mxu0 0.0
    %171 = vmatpush1.msra.mxu0 %v158
    %172 = vmatprep.subr.mxu0 0.0
    %173 = vmatpush1.msra.mxu0 %v157
    %174 = vmatprep.subr.mxu0 0.0
    %175 = vmatpush1.msra.mxu0 %v156
    %176 = vmatprep.subr.mxu0 0.0
    %177 = vmatpush1.msra.mxu0 %v155
    %178 = vmatprep.subr.mxu0 0.0
    %179 = vmatpush1.msra.mxu0 %v154
    %180 = vmatprep.subr.mxu0 0.0
    %181 = vmatpush1.msra.mxu0 %v153
    %182 = vmatprep.subr.mxu0 0.0
    %183 = vmatpush1.msra.mxu0 %v152
    %184 = vmatprep.subr.mxu0 0.0
    %185 = vmatpush1.msra.mxu0 %v151
    %186 = vmatprep.subr.mxu0 0.0
    %187 = vmatpush1.msra.mxu0 %v150
    %188 = vmatprep.subr.mxu0 0.0
    %189 = vmatpush1.msra.mxu0 %v149
    %190 = vmatprep.subr.mxu0 0.0
    %191 = vmatpush1.msra.mxu0 %v148
    %192 = vmatprep.subr.mxu0 0.0
    %193 = vmatpush1.msra.mxu0 %v147
    %194 = vmatprep.subr.mxu0 0.0
    %195 = vmatpush1.msra.mxu0 %v146
    %196 = vmatprep.subr.mxu0 0.0
    %197 = vmatpush1.msra.mxu0 %v145
    %198 = vmatprep.subr.mxu0 0.0
    %199 = vmatpush2.msra.mxu0 0.0
    %200 = vmatprep.subr.mxu0 0.0
    %201 = vmatpush2.msra.mxu0 0.0
    %202 = vmatprep.subr.mxu0 0.0
    %203 = vmatpush2.msra.mxu0 0.0
    %204 = vmatprep.subr.mxu0 0.0
    %205 = vmatpush2.msra.mxu0 0.0
    %206 = vmatprep.subr.mxu0 0.0
    %207 = vmatpush2.msra.mxu0 0.0
    %208 = vmatprep.subr.mxu0 0.0
    %209 = vmatpush2.msra.mxu0 0.0
    %210 = vmatprep.subr.mxu0 0.0
    %211 = vmatpush2.msra.mxu0 0.0
    %212 = vmatprep.subr.mxu0 0.0
    %213 = vmatpush2.msra.mxu0 0.0
    %214 = vmatprep.subr.mxu0 0.0
    %215 = vmatpush2.msra.mxu0 0.0
    %216 = vmatprep.subr.mxu0 0.0
    %217 = vmatpush2.msra.mxu0 0.0
    %218 = vmatprep.subr.mxu0 0.0
    %219 = vmatpush2.msra.mxu0 0.0
    %220 = vmatprep.subr.mxu0 0.0
    %221 = vmatpush2.msra.mxu0 0.0
    %222 = vmatprep.subr.mxu0 0.0
    %223 = vmatpush2.msra.mxu0 0.0
    %224 = vmatprep.subr.mxu0 0.0
    %225 = vmatpush2.msra.mxu0 0.0
    %226 = vmatprep.subr.mxu0 0.0
    %227 = vmatpush2.msra.mxu0 0.0
    %228 = vmatprep.subr.mxu0 0.0
    %229 = vmatpush2.msra.mxu0 0.0
    %230 = vmatprep.mubr.f32.mxu0 0.0
    %231 = vmatmul.mubr.f32.gmra.mxu0 %v144
    %v232 = vpop.f32.mrf.mxu0
    %v233 = vadd.f32 %v165, %v232
    %v234 = vpop.f32.mrf.mxu0
    %235 = vdwg.mxu0
    %v236 = vmax.f32 %v233, 0.0
    %v237 = vld [vmem:[#allocation6] sm:$0xff]
    %v238 = vld [vmem:[#allocation6 + $0x8] sm:$0xff]
    %v239 = vld [vmem:[#allocation6 + $0x10] sm:$0xff]
    %v240 = vld [vmem:[#allocation6 + $0x18] sm:$0xff]
    %v241 = vld [vmem:[#allocation6 + $0x20] sm:$0xff]
    %v242 = vld [vmem:[#allocation6 + $0x28] sm:$0xff]
    %v243 = vld [vmem:[#allocation6 + $0x30] sm:$0xff]
    %v244 = vld [vmem:[#allocation6 + $0x38] sm:$0xff]
    %v245 = vld [vmem:[#allocation6 + $0x40] sm:$0xff]
    %v246 = vld [vmem:[#allocation6 + $0x48] sm:$0xff]
    %v247 = vld [vmem:[#allocation6 + $0x50] sm:$0xff]
    %v248 = vld [vmem:[#allocation6 + $0x58] sm:$0xff]
    %v249 = vld [vmem:[#allocation6 + $0x60] sm:$0xff]
    %v250 = vld [vmem:[#allocation6 + $0x68] sm:$0xff]
    %v251 = vld [vmem:[#allocation6 + $0x70] sm:$0xff]
    %v252 = vld [vmem:[#allocation6 + $0x78] sm:$0xff]
    %v253 = vld [vmem:[%s5 + $0x2] sm:$0x1]
    %v254 = vlaneseq
    %v255 = vshrl.u32 %v254, 7
    %v256 = vsub.s32 0, %v255
    %v257 = vrot.slane %v253, %v256
    %258 = vmatprep.subr.mxu0 0.0
    %259 = vmatpush1.msra.mxu0 %v252
    %260 = vmatprep.subr.mxu0 0.0
    %261 = vmatpush1.msra.mxu0 %v251
    %262 = vmatprep.subr.mxu0 0.0
    %263 = vmatpush1.msra.mxu0 %v250
    %264 = vmatprep.subr.mxu0 0.0
    %265 = vmatpush1.msra.mxu0 %v249
    %266 = vmatprep.subr.mxu0 0.0
    %267 = vmatpush1.msra.mxu0 %v248
    %268 = vmatprep.subr.mxu0 0.0
    %269 = vmatpush1.msra.mxu0 %v247
    %270 = vmatprep.subr.mxu0 0.0
    %271 = vmatpush1.msra.mxu0 %v246
    %272 = vmatprep.subr.mxu0 0.0
    %273 = vmatpush1.msra.mxu0 %v245
    %274 = vmatprep.subr.mxu0 0.0
    %275 = vmatpush1.msra.mxu0 %v244
    %276 = vmatprep.subr.mxu0 0.0
    %277 = vmatpush1.msra.mxu0 %v243
    %278 = vmatprep.subr.mxu0 0.0
    %279 = vmatpush1.msra.mxu0 %v242
    %280 = vmatprep.subr.mxu0 0.0
    %281 = vmatpush1.msra.mxu0 %v241
    %282 = vmatprep.subr.mxu0 0.0
    %283 = vmatpush1.msra.mxu0 %v240
    %284 = vmatprep.subr.mxu0 0.0
    %285 = vmatpush1.msra.mxu0 %v239
    %286 = vmatprep.subr.mxu0 0.0
    %287 = vmatpush1.msra.mxu0 %v238
    %288 = vmatprep.subr.mxu0 0.0
    %289 = vmatpush1.msra.mxu0 %v237
    %290 = vmatprep.subr.mxu0 0.0
    %291 = vmatpush2.msra.mxu0 0.0
    %292 = vmatprep.subr.mxu0 0.0
    %293 = vmatpush2.msra.mxu0 0.0
    %294 = vmatprep.subr.mxu0 0.0
    %295 = vmatpush2.msra.mxu0 0.0
    %296 = vmatprep.subr.mxu0 0.0
    %297 = vmatpush2.msra.mxu0 0.0
    %298 = vmatprep.subr.mxu0 0.0
    %299 = vmatpush2.msra.mxu0 0.0
    %300 = vmatprep.subr.mxu0 0.0
    %301 = vmatpush2.msra.mxu0 0.0
    %302 = vmatprep.subr.mxu0 0.0
    %303 = vmatpush2.msra.mxu0 0.0
    %304 = vmatprep.subr.mxu0 0.0
    %305 = vmatpush2.msra.mxu0 0.0
    %306 = vmatprep.subr.mxu0 0.0
    %307 = vmatpush2.msra.mxu0 0.0
    %308 = vmatprep.subr.mxu0 0.0
    %309 = vmatpush2.msra.mxu0 0.0
    %310 = vmatprep.subr.mxu0 0.0
    %311 = vmatpush2.msra.mxu0 0.0
    %312 = vmatprep.subr.mxu0 0.0
    %313 = vmatpush2.msra.mxu0 0.0
    %314 = vmatprep.subr.mxu0 0.0
    %315 = vmatpush2.msra.mxu0 0.0
    %316 = vmatprep.subr.mxu0 0.0
    %317 = vmatpush2.msra.mxu0 0.0
    %318 = vmatprep.subr.mxu0 0.0
    %319 = vmatpush2.msra.mxu0 0.0
    %320 = vmatprep.subr.mxu0 0.0
    %321 = vmatpush2.msra.mxu0 0.0
    %322 = vmatprep.mubr.f32.mxu0 0.0
    %323 = vmatmul.mubr.f32.gmra.mxu0 %v236
    %v324 = vpop.f32.mrf.mxu0
    %v325 = vadd.f32 %v257, %v324
    %v326 = vpop.f32.mrf.mxu0
    %327 = vdwg.mxu0
    %v328 = vmax.f32 %v325, 0.0
    %v329 = vld [vmem:[%s4] sm:$0xff]
    %v330 = vld [vmem:[%s4 + $0x8] sm:$0xff]
    %v331 = vld [vmem:[%s4 + $0x10] sm:$0xff]
    %v332 = vld [vmem:[%s4 + $0x18] sm:$0xff]
    %v333 = vld [vmem:[%s4 + $0x20] sm:$0xff]
    %v334 = vld [vmem:[%s4 + $0x28] sm:$0xff]
    %v335 = vld [vmem:[%s4 + $0x30] sm:$0xff]
    %v336 = vld [vmem:[%s4 + $0x38] sm:$0xff]
    %v337 = vld [vmem:[%s4 + $0x40] sm:$0xff]
    %v338 = vld [vmem:[%s4 + $0x48] sm:$0xff]
    %v339 = vld [vmem:[%s4 + $0x50] sm:$0xff]
    %v340 = vld [vmem:[%s4 + $0x58] sm:$0xff]
    %v341 = vld [vmem:[%s4 + $0x60] sm:$0xff]
    %v342 = vld [vmem:[%s4 + $0x68] sm:$0xff]
    %v343 = vld [vmem:[%s4 + $0x70] sm:$0xff]
    %v344 = vld [vmem:[%s4 + $0x78] sm:$0xff]
    %v345 = vld [vmem:[%s5 + $0x3] sm:$0x1]
    %v346 = vlaneseq
    %v347 = vshrl.u32 %v346, 7
    %v348 = vsub.s32 0, %v347
    %v349 = vrot.slane %v345, %v348
    %350 = vmatprep.subr.mxu0 0.0
    %351 = vmatpush1.msra.mxu0 %v344
    %352 = vmatprep.subr.mxu0 0.0
    %353 = vmatpush1.msra.mxu0 %v343
    %354 = vmatprep.subr.mxu0 0.0
    %355 = vmatpush1.msra.mxu0 %v342
    %356 = vmatprep.subr.mxu0 0.0
    %357 = vmatpush1.msra.mxu0 %v341
    %358 = vmatprep.subr.mxu0 0.0
    %359 = vmatpush1.msra.mxu0 %v340
    %360 = vmatprep.subr.mxu0 0.0
    %361 = vmatpush1.msra.mxu0 %v339
    %362 = vmatprep.subr.mxu0 0.0
    %363 = vmatpush1.msra.mxu0 %v338
    %364 = vmatprep.subr.mxu0 0.0
    %365 = vmatpush1.msra.mxu0 %v337
    %366 = vmatprep.subr.mxu0 0.0
    %367 = vmatpush1.msra.mxu0 %v336
    %368 = vmatprep.subr.mxu0 0.0
    %369 = vmatpush1.msra.mxu0 %v335
    %370 = vmatprep.subr.mxu0 0.0
    %371 = vmatpush1.msra.mxu0 %v334
    %372 = vmatprep.subr.mxu0 0.0
    %373 = vmatpush1.msra.mxu0 %v333
    %374 = vmatprep.subr.mxu0 0.0
    %375 = vmatpush1.msra.mxu0 %v332
    %376 = vmatprep.subr.mxu0 0.0
    %377 = vmatpush1.msra.mxu0 %v331
    %378 = vmatprep.subr.mxu0 0.0
    %379 = vmatpush1.msra.mxu0 %v330
    %380 = vmatprep.subr.mxu0 0.0
    %381 = vmatpush1.msra.mxu0 %v329
    %382 = vmatprep.subr.mxu0 0.0
    %383 = vmatpush2.msra.mxu0 0.0
    %384 = vmatprep.subr.mxu0 0.0
    %385 = vmatpush2.msra.mxu0 0.0
    %386 = vmatprep.subr.mxu0 0.0
    %387 = vmatpush2.msra.mxu0 0.0
    %388 = vmatprep.subr.mxu0 0.0
    %389 = vmatpush2.msra.mxu0 0.0
    %390 = vmatprep.subr.mxu0 0.0
    %391 = vmatpush2.msra.mxu0 0.0
    %392 = vmatprep.subr.mxu0 0.0
    %393 = vmatpush2.msra.mxu0 0.0
    %394 = vmatprep.subr.mxu0 0.0
    %395 = vmatpush2.msra.mxu0 0.0
    %396 = vmatprep.subr.mxu0 0.0
    %397 = vmatpush2.msra.mxu0 0.0
    %398 = vmatprep.subr.mxu0 0.0
    %399 = vmatpush2.msra.mxu0 0.0
    %400 = vmatprep.subr.mxu0 0.0
    %401 = vmatpush2.msra.mxu0 0.0
    %402 = vmatprep.subr.mxu0 0.0
    %403 = vmatpush2.msra.mxu0 0.0
    %404 = vmatprep.subr.mxu0 0.0
    %405 = vmatpush2.msra.mxu0 0.0
    %406 = vmatprep.subr.mxu0 0.0
    %407 = vmatpush2.msra.mxu0 0.0
    %408 = vmatprep.subr.mxu0 0.0
    %409 = vmatpush2.msra.mxu0 0.0
    %410 = vmatprep.subr.mxu0 0.0
    %411 = vmatpush2.msra.mxu0 0.0
    %412 = vmatprep.subr.mxu0 0.0
    %413 = vmatpush2.msra.mxu0 0.0
    %414 = vmatprep.mubr.f32.mxu0 0.0
    %415 = vmatmul.mubr.f32.gmra.mxu0 %v328
    %v416 = vpop.f32.mrf.mxu0
    %v417 = vadd.f32 %v349, %v416
    %v418 = vpop.f32.mrf.mxu0
    %419 = vdwg.mxu0
    %vm420 = vcmask 31744
    %421 = vst.msk [vmem:[%s6] sm:$0xff] %vm420, %v417
    // Predicated region
    $region38: #{tpu_custom_call.1} parent=1 // pred_check
      _
    $region39: #{tpu_custom_call.1} parent=1 // pred_check_branch
      %423 = sbr.rel (0) target = $region41
    $region40: #{tpu_custom_call.1} parent=1 // pred_region
      _
    $region41: #{tpu_custom_call.1} parent=1 // pred_fallthru
      _
    // Predicated region
    $region42: #{tpu_custom_call.1} parent=1 // pred_check
      _
    $region43: #{tpu_custom_call.1} parent=1 // pred_check_branch
      %425 = sbr.rel (0) target = $region45
    $region44: #{tpu_custom_call.1} parent=1 // pred_region
      _
    $region45: #{tpu_custom_call.1} parent=1 // pred_fallthru
      _
    %426 = vsyncpa [#allocation3], 1
    %427 = vsyncpa [#allocation5], 1

// kernel: tpu_custom_call.1
$region0: #{tpu_custom_call.1}
  #allocation0 [shape = 'u32[]', space=smem, size = 0x4, offset = 0x4, fixed_abs, tag = 'smem constant byte address 0x4 - core index']
  #allocation1 [shape = 'u32[144,128]{1,0:T(1,128)}', space=vmem, size = 0x12000, scoped, tag = 'internal scratch']
  %s0 = inlined_call_operand.hbm [shape: f32[8,16], index: 0, kind: input, shape index: {}]
  %s1 = inlined_call_operand.hbm [shape: f32[16,128], index: 1, kind: input, shape index: {}]
  %s2 = inlined_call_operand.vmem [shape: f32[128,128], index: 2, kind: input, shape index: {}]
  %s3 = inlined_call_operand.hbm [shape: f32[128,128], index: 3, kind: input, shape index: {}]
  %s4 = inlined_call_operand.vmem [shape: f32[128,4], index: 4, kind: input, shape index: {}]
  %s5 = inlined_call_operand.vmem [shape: f32[4,128], index: 5, kind: input, shape index: {}]
  %s6 = inlined_call_operand.vmem [shape: f32[8,4], index: 6, kind: output, shape index: {}]
  %s7 = sld [smem:[#allocation0]]
  $region46: #{tpu_custom_call.1} parent=0
    _
  %s9 = ssub.s32 1, %s7
  %s10 = scalar_select 0, %s9, %s7
  $region1: #{tpu_custom_call.1} parent=0
    #allocation2 [shape = 'u8[4096]{0}', space=vmem, size = 0x1000, scoped, tag = 'input window, operand 0, single buffered']
    #allocation3 [shape = 's32[1]{0}', space=sflag, size = 0x4, scoped, tag = 'scoped memory for tpu_custom_call.1']
    #allocation4 [shape = 'u8[8192]{0}', space=vmem, size = 0x2000, scoped, tag = 'input window, operand 1, single buffered']
    #allocation5 [shape = 's32[1]{0}', space=sflag, size = 0x4, scoped, tag = 'scoped memory for tpu_custom_call.1']
    #allocation6 [shape = 'u8[65536]{0}', space=vmem, size = 0x10000, scoped, tag = 'input window, operand 3, single buffered']
    %11 = vsyncpa [#allocation3], 0
    %12 = vsyncpa [#allocation5], 0
    // Predicated region
    $region2: #{tpu_custom_call.1} parent=1 // pred_check
      _
    $region3: #{tpu_custom_call.1} parent=1 // pred_check_branch
      %14 = sbr.rel (0) target = $region5
    $region4: #{tpu_custom_call.1} parent=1 // pred_region
      %s16 = ssub.s32 128, 128
      %17 = vsyncadd [#allocation3], %s16
      %s19 = sshll.u32 [#allocation2], 4
      %s20 = int_to_ptr.vmem [resolvable:$true] %s19
      %22 = dma.hbm_to_vmem [thread:$0]  %s0, 128, %s20, [#allocation3]
    $region5: #{tpu_custom_call.1} parent=1 // pred_fallthru
      _
    // Predicated region
    $region6: #{tpu_custom_call.1} parent=1 // pred_check
      _
    $region7: #{tpu_custom_call.1} parent=1 // pred_check_branch
      %24 = sbr.rel (0) target = $region9
    $region8: #{tpu_custom_call.1} parent=1 // pred_region
      %s26 = ssub.s32 256, 256
      %27 = vsyncadd [#allocation5], %s26
      %s28 = sshll.u32 [#allocation4], 4
      %s29 = int_to_ptr.vmem [resolvable:$true] %s28
      %34 = dma.hbm_to_vmem [thread:$0]  %s1, 256, %s29, [#allocation5], 128, 128, 8
    $region9: #{tpu_custom_call.1} parent=1 // pred_fallthru
      _
    // Predicated region
    $region10: #{tpu_custom_call.1} parent=1 // pred_check
      _
    $region11: #{tpu_custom_call.1} parent=1 // pred_check_branch
      %36 = sbr.rel (0) target = $region13
    $region12: #{tpu_custom_call.1} parent=1 // pred_region
      _
    $region13: #{tpu_custom_call.1} parent=1 // pred_fallthru
      _
    // Predicated region
    $region14: #{tpu_custom_call.1} parent=1 // pred_check
      _
    $region15: #{tpu_custom_call.1} parent=1 // pred_check_branch
      %38 = sbr.rel (0) target = $region17
    $region16: #{tpu_custom_call.1} parent=1 // pred_region
      %s40 = ssub.s32 2048, 2048
      %41 = vsyncadd [#allocation5], %s40
      %s42 = sshll.u32 [#allocation6], 4
      %s43 = int_to_ptr.vmem [resolvable:$true] %s42
      %48 = dma.hbm_to_vmem [thread:$0]  %s3, 2048, %s43, [#allocation5], 128, 128, 8
    $region17: #{tpu_custom_call.1} parent=1 // pred_fallthru
      _
    // Predicated region
    $region18: #{tpu_custom_call.1} parent=1 // pred_check
      _
    $region19: #{tpu_custom_call.1} parent=1 // pred_check_branch
      %50 = sbr.rel (0) target = $region21
    $region20: #{tpu_custom_call.1} parent=1 // pred_region
      _
    $region21: #{tpu_custom_call.1} parent=1 // pred_fallthru
      _
    // Predicated region
    $region22: #{tpu_custom_call.1} parent=1 // pred_check
      _
    $region23: #{tpu_custom_call.1} parent=1 // pred_check_branch
      %52 = sbr.rel (0) target = $region25
    $region24: #{tpu_custom_call.1} parent=1 // pred_region
      _
    $region25: #{tpu_custom_call.1} parent=1 // pred_fallthru
      _
    // Predicated region
    $region26: #{tpu_custom_call.1} parent=1 // pred_check
      _
    $region27: #{tpu_custom_call.1} parent=1 // pred_check_branch
      %54 = sbr.rel (0) target = $region29
    $region28: #{tpu_custom_call.1} parent=1 // pred_region
      %55 = dma.done [#allocation3], 128
    $region29: #{tpu_custom_call.1} parent=1 // pred_fallthru
      _
    // Predicated region
    $region30: #{tpu_custom_call.1} parent=1 // pred_check
      _
    $region31: #{tpu_custom_call.1} parent=1 // pred_check_branch
      %57 = sbr.rel (0) target = $region33
    $region32: #{tpu_custom_call.1} parent=1 // pred_region
      %58 = dma.done [#allocation5], 256
    $region33: #{tpu_custom_call.1} parent=1 // pred_fallthru
      _
    // Predicated region
    $region34: #{tpu_custom_call.1} parent=1 // pred_check
      _
    $region35: #{tpu_custom_call.1} parent=1 // pred_check_branch
      %60 = sbr.rel (0) target = $region37
    $region36: #{tpu_custom_call.1} parent=1 // pred_region
      %61 = dma.done [#allocation5], 2048
    $region37: #{tpu_custom_call.1} parent=1 // pred_fallthru
      _
    %v62 = vld [vmem:[#allocation2] sm:$0xff]
    %v63 = vld [vmem:[#allocation4] sm:$0xff]
    %v64 = vld [vmem:[#allocation4 + $0x8] sm:$0xff]
    %v65 = vld [vmem:[%s5] sm:$0x1]
    %v66 = vlaneseq
    %v67 = vshrl.u32 %v66, 7
    %v68 = vsub.s32 0, %v67
    %v69 = vrot.slane %v65, %v68
    %vm70 = vcmask 130048
    %v72 = vsel %vm70, %v62, 0
    %74 = vmatprep.subr.mxu0 0.0
    %75 = vmatpush1.msra.mxu0 0.0
    %76 = vmatprep.subr.mxu0 0.0
    %77 = vmatpush1.msra.mxu0 0.0
    %78 = vmatprep.subr.mxu0 0.0
    %79 = vmatpush1.msra.mxu0 0.0
    %80 = vmatprep.subr.mxu0 0.0
    %81 = vmatpush1.msra.mxu0 0.0
    %82 = vmatprep.subr.mxu0 0.0
    %83 = vmatpush1.msra.mxu0 0.0
    %84 = vmatprep.subr.mxu0 0.0
    %85 = vmatpush1.msra.mxu0 0.0
    %86 = vmatprep.subr.mxu0 0.0
    %87 = vmatpush1.msra.mxu0 0.0
    %88 = vmatprep.subr.mxu0 0.0
    %89 = vmatpush1.msra.mxu0 0.0
    %90 = vmatprep.subr.mxu0 0.0
    %91 = vmatpush1.msra.mxu0 0.0
    %92 = vmatprep.subr.mxu0 0.0
    %93 = vmatpush1.msra.mxu0 0.0
    %94 = vmatprep.subr.mxu0 0.0
    %95 = vmatpush1.msra.mxu0 0.0
    %96 = vmatprep.subr.mxu0 0.0
    %97 = vmatpush1.msra.mxu0 0.0
    %98 = vmatprep.subr.mxu0 0.0
    %99 = vmatpush1.msra.mxu0 0.0
    %100 = vmatprep.subr.mxu0 0.0
    %101 = vmatpush1.msra.mxu0 0.0
    %102 = vmatprep.subr.mxu0 0.0
    %103 = vmatpush1.msra.mxu0 %v64
    %104 = vmatprep.subr.mxu0 0.0
    %105 = vmatpush1.msra.mxu0 %v63
    %106 = vmatprep.subr.mxu0 0.0
    %107 = vmatpush2.msra.mxu0 0.0
    %108 = vmatprep.subr.mxu0 0.0
    %109 = vmatpush2.msra.mxu0 0.0
    %110 = vmatprep.subr.mxu0 0.0
    %111 = vmatpush2.msra.mxu0 0.0
    %112 = vmatprep.subr.mxu0 0.0
    %113 = vmatpush2.msra.mxu0 0.0
    %114 = vmatprep.subr.mxu0 0.0
    %115 = vmatpush2.msra.mxu0 0.0
    %116 = vmatprep.subr.mxu0 0.0
    %117 = vmatpush2.msra.mxu0 0.0
    %118 = vmatprep.subr.mxu0 0.0
    %119 = vmatpush2.msra.mxu0 0.0
    %120 = vmatprep.subr.mxu0 0.0
    %121 = vmatpush2.msra.mxu0 0.0
    %122 = vmatprep.subr.mxu0 0.0
    %123 = vmatpush2.msra.mxu0 0.0
    %124 = vmatprep.subr.mxu0 0.0
    %125 = vmatpush2.msra.mxu0 0.0
    %126 = vmatprep.subr.mxu0 0.0
    %127 = vmatpush2.msra.mxu0 0.0
    %128 = vmatprep.subr.mxu0 0.0
    %129 = vmatpush2.msra.mxu0 0.0
    %130 = vmatprep.subr.mxu0 0.0
    %131 = vmatpush2.msra.mxu0 0.0
    %132 = vmatprep.subr.mxu0 0.0
    %133 = vmatpush2.msra.mxu0 0.0
    %134 = vmatprep.subr.mxu0 0.0
    %135 = vmatpush2.msra.mxu0 0.0
    %136 = vmatprep.subr.mxu0 0.0
    %137 = vmatpush2.msra.mxu0 0.0
    %138 = vmatprep.mubr.f32.mxu0 0.0
    %139 = vmatmul.mubr.f32.gmra.mxu0 %v72
    %v140 = vpop.f32.mrf.mxu0
    %v141 = vadd.f32 %v69, %v140
    %v142 = vpop.f32.mrf.mxu0
    %143 = vdwg.mxu0
    %v144 = vmax.f32 %v141, 0.0
    %v145 = vld [vmem:[%s2] sm:$0xff]
    %v146 = vld [vmem:[%s2 + $0x8] sm:$0xff]
    %v147 = vld [vmem:[%s2 + $0x10] sm:$0xff]
    %v148 = vld [vmem:[%s2 + $0x18] sm:$0xff]
    %v149 = vld [vmem:[%s2 + $0x20] sm:$0xff]
    %v150 = vld [vmem:[%s2 + $0x28] sm:$0xff]
    %v151 = vld [vmem:[%s2 + $0x30] sm:$0xff]
    %v152 = vld [vmem:[%s2 + $0x38] sm:$0xff]
    %v153 = vld [vmem:[%s2 + $0x40] sm:$0xff]
    %v154 = vld [vmem:[%s2 + $0x48] sm:$0xff]
    %v155 = vld [vmem:[%s2 + $0x50] sm:$0xff]
    %v156 = vld [vmem:[%s2 + $0x58] sm:$0xff]
    %v157 = vld [vmem:[%s2 + $0x60] sm:$0xff]
    %v158 = vld [vmem:[%s2 + $0x68] sm:$0xff]
    %v159 = vld [vmem:[%s2 + $0x70] sm:$0xff]
    %v160 = vld [vmem:[%s2 + $0x78] sm:$0xff]
    %v161 = vld [vmem:[%s5 + $0x1] sm:$0x1]
    %v162 = vlaneseq
    %v163 = vshrl.u32 %v162, 7
    %v164 = vsub.s32 0, %v163
    %v165 = vrot.slane %v161, %v164
    %166 = vmatprep.subr.mxu0 0.0
    %167 = vmatpush1.msra.mxu0 %v160
    %168 = vmatprep.subr.mxu0 0.0
    %169 = vmatpush1.msra.mxu0 %v159
    %170 = vmatprep.subr.mxu0 0.0
    %171 = vmatpush1.msra.mxu0 %v158
    %172 = vmatprep.subr.mxu0 0.0
    %173 = vmatpush1.msra.mxu0 %v157
    %174 = vmatprep.subr.mxu0 0.0
    %175 = vmatpush1.msra.mxu0 %v156
    %176 = vmatprep.subr.mxu0 0.0
    %177 = vmatpush1.msra.mxu0 %v155
    %178 = vmatprep.subr.mxu0 0.0
    %179 = vmatpush1.msra.mxu0 %v154
    %180 = vmatprep.subr.mxu0 0.0
    %181 = vmatpush1.msra.mxu0 %v153
    %182 = vmatprep.subr.mxu0 0.0
    %183 = vmatpush1.msra.mxu0 %v152
    %184 = vmatprep.subr.mxu0 0.0
    %185 = vmatpush1.msra.mxu0 %v151
    %186 = vmatprep.subr.mxu0 0.0
    %187 = vmatpush1.msra.mxu0 %v150
    %188 = vmatprep.subr.mxu0 0.0
    %189 = vmatpush1.msra.mxu0 %v149
    %190 = vmatprep.subr.mxu0 0.0
    %191 = vmatpush1.msra.mxu0 %v148
    %192 = vmatprep.subr.mxu0 0.0
    %193 = vmatpush1.msra.mxu0 %v147
    %194 = vmatprep.subr.mxu0 0.0
    %195 = vmatpush1.msra.mxu0 %v146
    %196 = vmatprep.subr.mxu0 0.0
    %197 = vmatpush1.msra.mxu0 %v145
    %198 = vmatprep.subr.mxu0 0.0
    %199 = vmatpush2.msra.mxu0 0.0
    %200 = vmatprep.subr.mxu0 0.0
    %201 = vmatpush2.msra.mxu0 0.0
    %202 = vmatprep.subr.mxu0 0.0
    %203 = vmatpush2.msra.mxu0 0.0
    %204 = vmatprep.subr.mxu0 0.0
    %205 = vmatpush2.msra.mxu0 0.0
    %206 = vmatprep.subr.mxu0 0.0
    %207 = vmatpush2.msra.mxu0 0.0
    %208 = vmatprep.subr.mxu0 0.0
    %209 = vmatpush2.msra.mxu0 0.0
    %210 = vmatprep.subr.mxu0 0.0
    %211 = vmatpush2.msra.mxu0 0.0
    %212 = vmatprep.subr.mxu0 0.0
    %213 = vmatpush2.msra.mxu0 0.0
    %214 = vmatprep.subr.mxu0 0.0
    %215 = vmatpush2.msra.mxu0 0.0
    %216 = vmatprep.subr.mxu0 0.0
    %217 = vmatpush2.msra.mxu0 0.0
    %218 = vmatprep.subr.mxu0 0.0
    %219 = vmatpush2.msra.mxu0 0.0
    %220 = vmatprep.subr.mxu0 0.0
    %221 = vmatpush2.msra.mxu0 0.0
    %222 = vmatprep.subr.mxu0 0.0
    %223 = vmatpush2.msra.mxu0 0.0
    %224 = vmatprep.subr.mxu0 0.0
    %225 = vmatpush2.msra.mxu0 0.0
    %226 = vmatprep.subr.mxu0 0.0
    %227 = vmatpush2.msra.mxu0 0.0
    %228 = vmatprep.subr.mxu0 0.0
    %229 = vmatpush2.msra.mxu0 0.0
    %230 = vmatprep.mubr.f32.mxu0 0.0
    %231 = vmatmul.mubr.f32.gmra.mxu0 %v144
    %v232 = vpop.f32.mrf.mxu0
    %v233 = vadd.f32 %v165, %v232
    %v234 = vpop.f32.mrf.mxu0
    %235 = vdwg.mxu0
    %v236 = vmax.f32 %v233, 0.0
    %v237 = vld [vmem:[#allocation6] sm:$0xff]
    %v238 = vld [vmem:[#allocation6 + $0x8] sm:$0xff]
    %v239 = vld [vmem:[#allocation6 + $0x10] sm:$0xff]
    %v240 = vld [vmem:[#allocation6 + $0x18] sm:$0xff]
    %v241 = vld [vmem:[#allocation6 + $0x20] sm:$0xff]
    %v242 = vld [vmem:[#allocation6 + $0x28] sm:$0xff]
    %v243 = vld [vmem:[#allocation6 + $0x30] sm:$0xff]
    %v244 = vld [vmem:[#allocation6 + $0x38] sm:$0xff]
    %v245 = vld [vmem:[#allocation6 + $0x40] sm:$0xff]
    %v246 = vld [vmem:[#allocation6 + $0x48] sm:$0xff]
    %v247 = vld [vmem:[#allocation6 + $0x50] sm:$0xff]
    %v248 = vld [vmem:[#allocation6 + $0x58] sm:$0xff]
    %v249 = vld [vmem:[#allocation6 + $0x60] sm:$0xff]
    %v250 = vld [vmem:[#allocation6 + $0x68] sm:$0xff]
    %v251 = vld [vmem:[#allocation6 + $0x70] sm:$0xff]
    %v252 = vld [vmem:[#allocation6 + $0x78] sm:$0xff]
    %v253 = vld [vmem:[%s5 + $0x2] sm:$0x1]
    %v254 = vlaneseq
    %v255 = vshrl.u32 %v254, 7
    %v256 = vsub.s32 0, %v255
    %v257 = vrot.slane %v253, %v256
    %258 = vmatprep.subr.mxu0 0.0
    %259 = vmatpush1.msra.mxu0 %v252
    %260 = vmatprep.subr.mxu0 0.0
    %261 = vmatpush1.msra.mxu0 %v251
    %262 = vmatprep.subr.mxu0 0.0
    %263 = vmatpush1.msra.mxu0 %v250
    %264 = vmatprep.subr.mxu0 0.0
    %265 = vmatpush1.msra.mxu0 %v249
    %266 = vmatprep.subr.mxu0 0.0
    %267 = vmatpush1.msra.mxu0 %v248
    %268 = vmatprep.subr.mxu0 0.0
    %269 = vmatpush1.msra.mxu0 %v247
    %270 = vmatprep.subr.mxu0 0.0
    %271 = vmatpush1.msra.mxu0 %v246
    %272 = vmatprep.subr.mxu0 0.0
    %273 = vmatpush1.msra.mxu0 %v245
    %274 = vmatprep.subr.mxu0 0.0
    %275 = vmatpush1.msra.mxu0 %v244
    %276 = vmatprep.subr.mxu0 0.0
    %277 = vmatpush1.msra.mxu0 %v243
    %278 = vmatprep.subr.mxu0 0.0
    %279 = vmatpush1.msra.mxu0 %v242
    %280 = vmatprep.subr.mxu0 0.0
    %281 = vmatpush1.msra.mxu0 %v241
    %282 = vmatprep.subr.mxu0 0.0
    %283 = vmatpush1.msra.mxu0 %v240
    %284 = vmatprep.subr.mxu0 0.0
    %285 = vmatpush1.msra.mxu0 %v239
    %286 = vmatprep.subr.mxu0 0.0
    %287 = vmatpush1.msra.mxu0 %v238
    %288 = vmatprep.subr.mxu0 0.0
    %289 = vmatpush1.msra.mxu0 %v237
    %290 = vmatprep.subr.mxu0 0.0
    %291 = vmatpush2.msra.mxu0 0.0
    %292 = vmatprep.subr.mxu0 0.0
    %293 = vmatpush2.msra.mxu0 0.0
    %294 = vmatprep.subr.mxu0 0.0
    %295 = vmatpush2.msra.mxu0 0.0
    %296 = vmatprep.subr.mxu0 0.0
    %297 = vmatpush2.msra.mxu0 0.0
    %298 = vmatprep.subr.mxu0 0.0
    %299 = vmatpush2.msra.mxu0 0.0
    %300 = vmatprep.subr.mxu0 0.0
    %301 = vmatpush2.msra.mxu0 0.0
    %302 = vmatprep.subr.mxu0 0.0
    %303 = vmatpush2.msra.mxu0 0.0
    %304 = vmatprep.subr.mxu0 0.0
    %305 = vmatpush2.msra.mxu0 0.0
    %306 = vmatprep.subr.mxu0 0.0
    %307 = vmatpush2.msra.mxu0 0.0
    %308 = vmatprep.subr.mxu0 0.0
    %309 = vmatpush2.msra.mxu0 0.0
    %310 = vmatprep.subr.mxu0 0.0
    %311 = vmatpush2.msra.mxu0 0.0
    %312 = vmatprep.subr.mxu0 0.0
    %313 = vmatpush2.msra.mxu0 0.0
    %314 = vmatprep.subr.mxu0 0.0
    %315 = vmatpush2.msra.mxu0 0.0
    %316 = vmatprep.subr.mxu0 0.0
    %317 = vmatpush2.msra.mxu0 0.0
    %318 = vmatprep.subr.mxu0 0.0
    %319 = vmatpush2.msra.mxu0 0.0
    %320 = vmatprep.subr.mxu0 0.0
    %321 = vmatpush2.msra.mxu0 0.0
    %322 = vmatprep.mubr.f32.mxu0 0.0
    %323 = vmatmul.mubr.f32.gmra.mxu0 %v236
    %v324 = vpop.f32.mrf.mxu0
    %v325 = vadd.f32 %v257, %v324
    %v326 = vpop.f32.mrf.mxu0
    %327 = vdwg.mxu0
    %v328 = vmax.f32 %v325, 0.0
    %v329 = vld [vmem:[%s4] sm:$0xff]
    %v330 = vld [vmem:[%s4 + $0x8] sm:$0xff]
    %v331 = vld [vmem:[%s4 + $0x10] sm:$0xff]
    %v332 = vld [vmem:[%s4 + $0x18] sm:$0xff]
    %v333 = vld [vmem:[%s4 + $0x20] sm:$0xff]
    %v334 = vld [vmem:[%s4 + $0x28] sm:$0xff]
    %v335 = vld [vmem:[%s4 + $0x30] sm:$0xff]
    %v336 = vld [vmem:[%s4 + $0x38] sm:$0xff]
    %v337 = vld [vmem:[%s4 + $0x40] sm:$0xff]
    %v338 = vld [vmem:[%s4 + $0x48] sm:$0xff]
    %v339 = vld [vmem:[%s4 + $0x50] sm:$0xff]
    %v340 = vld [vmem:[%s4 + $0x58] sm:$0xff]
    %v341 = vld [vmem:[%s4 + $0x60] sm:$0xff]
    %v342 = vld [vmem:[%s4 + $0x68] sm:$0xff]
    %v343 = vld [vmem:[%s4 + $0x70] sm:$0xff]
    %v344 = vld [vmem:[%s4 + $0x78] sm:$0xff]
    %v345 = vld [vmem:[%s5 + $0x3] sm:$0x1]
    %v346 = vlaneseq
    %v347 = vshrl.u32 %v346, 7
    %v348 = vsub.s32 0, %v347
    %v349 = vrot.slane %v345, %v348
    %350 = vmatprep.subr.mxu0 0.0
    %351 = vmatpush1.msra.mxu0 %v344
    %352 = vmatprep.subr.mxu0 0.0
    %353 = vmatpush1.msra.mxu0 %v343
    %354 = vmatprep.subr.mxu0 0.0
    %355 = vmatpush1.msra.mxu0 %v342
    %356 = vmatprep.subr.mxu0 0.0
    %357 = vmatpush1.msra.mxu0 %v341
    %358 = vmatprep.subr.mxu0 0.0
    %359 = vmatpush1.msra.mxu0 %v340
    %360 = vmatprep.subr.mxu0 0.0
    %361 = vmatpush1.msra.mxu0 %v339
    %362 = vmatprep.subr.mxu0 0.0
    %363 = vmatpush1.msra.mxu0 %v338
    %364 = vmatprep.subr.mxu0 0.0
    %365 = vmatpush1.msra.mxu0 %v337
    %366 = vmatprep.subr.mxu0 0.0
    %367 = vmatpush1.msra.mxu0 %v336
    %368 = vmatprep.subr.mxu0 0.0
    %369 = vmatpush1.msra.mxu0 %v335
    %370 = vmatprep.subr.mxu0 0.0
    %371 = vmatpush1.msra.mxu0 %v334
    %372 = vmatprep.subr.mxu0 0.0
    %373 = vmatpush1.msra.mxu0 %v333
    %374 = vmatprep.subr.mxu0 0.0
    %375 = vmatpush1.msra.mxu0 %v332
    %376 = vmatprep.subr.mxu0 0.0
    %377 = vmatpush1.msra.mxu0 %v331
    %378 = vmatprep.subr.mxu0 0.0
    %379 = vmatpush1.msra.mxu0 %v330
    %380 = vmatprep.subr.mxu0 0.0
    %381 = vmatpush1.msra.mxu0 %v329
    %382 = vmatprep.subr.mxu0 0.0
    %383 = vmatpush2.msra.mxu0 0.0
    %384 = vmatprep.subr.mxu0 0.0
    %385 = vmatpush2.msra.mxu0 0.0
    %386 = vmatprep.subr.mxu0 0.0
    %387 = vmatpush2.msra.mxu0 0.0
    %388 = vmatprep.subr.mxu0 0.0
    %389 = vmatpush2.msra.mxu0 0.0
    %390 = vmatprep.subr.mxu0 0.0
    %391 = vmatpush2.msra.mxu0 0.0
    %392 = vmatprep.subr.mxu0 0.0
    %393 = vmatpush2.msra.mxu0 0.0
    %394 = vmatprep.subr.mxu0 0.0
    %395 = vmatpush2.msra.mxu0 0.0
    %396 = vmatprep.subr.mxu0 0.0
    %397 = vmatpush2.msra.mxu0 0.0
    %398 = vmatprep.subr.mxu0 0.0
    %399 = vmatpush2.msra.mxu0 0.0
    %400 = vmatprep.subr.mxu0 0.0
    %401 = vmatpush2.msra.mxu0 0.0
    %402 = vmatprep.subr.mxu0 0.0
    %403 = vmatpush2.msra.mxu0 0.0
    %404 = vmatprep.subr.mxu0 0.0
    %405 = vmatpush2.msra.mxu0 0.0
    %406 = vmatprep.subr.mxu0 0.0
    %407 = vmatpush2.msra.mxu0 0.0
    %408 = vmatprep.subr.mxu0 0.0
    %409 = vmatpush2.msra.mxu0 0.0
    %410 = vmatprep.subr.mxu0 0.0
    %411 = vmatpush2.msra.mxu0 0.0
    %412 = vmatprep.subr.mxu0 0.0
    %413 = vmatpush2.msra.mxu0 0.0
    %414 = vmatprep.mubr.f32.mxu0 0.0
    %415 = vmatmul.mubr.f32.gmra.mxu0 %v328
    %v416 = vpop.f32.mrf.mxu0
    %v417 = vadd.f32 %v349, %v416
    %v418 = vpop.f32.mrf.mxu0
    %419 = vdwg.mxu0
    %vm420 = vcmask 31744
    %421 = vst.msk [vmem:[%s6] sm:$0xff] %vm420, %v417
    // Predicated region
    $region38: #{tpu_custom_call.1} parent=1 // pred_check
      _
    $region39: #{tpu_custom_call.1} parent=1 // pred_check_branch
      %423 = sbr.rel (0) target = $region41
    $region40: #{tpu_custom_call.1} parent=1 // pred_region
      _
    $region41: #{tpu_custom_call.1} parent=1 // pred_fallthru
      _
    // Predicated region
    $region42: #{tpu_custom_call.1} parent=1 // pred_check
      _
    $region43: #{tpu_custom_call.1} parent=1 // pred_check_branch
      %425 = sbr.rel (0) target = $region45
    $region44: #{tpu_custom_call.1} parent=1 // pred_region
      _
    $region45: #{tpu_custom_call.1} parent=1 // pred_fallthru
      _
    %426 = vsyncpa [#allocation3], 1
    %427 = vsyncpa [#allocation5], 1

</llo_original>
